<compile_context>
chip_gen: v6e
topology: v6e:2x2x1
jax: 0.10.0
libtpu: 0.0.40
codegen_flags: <defaults>
</compile_context>

<pallas_src>
import jax
import jax.numpy as jnp
from jax import lax
from jax.experimental import pallas as pl
from jax.experimental.pallas import tpu as pltpu

LANE = 128  # vreg lane width


def qvaluenet_kernel(x_ref, a_ref, w1x_ref, w1a_ref, b1_ref, w2_ref, b2_ref,
                     w3t_ref, b3_ref, out_ref):
    # fc1 + ReLU : concat eliminated by splitting W1 into state/action halves.
    x = x_ref[...].astype(jnp.bfloat16)
    a = a_ref[...].astype(jnp.bfloat16)
    h1 = jnp.dot(x, w1x_ref[...], preferred_element_type=jnp.float32)
    h1 = h1 + jnp.dot(a, w1a_ref[...], preferred_element_type=jnp.float32)
    h1 = jnp.maximum(h1 + b1_ref[...], 0.0)                      # (TB, Hp) f32

    # fc2 + ReLU
    h2 = jnp.dot(h1.astype(jnp.bfloat16), w2_ref[...],
                 preferred_element_type=jnp.float32)
    h2 = jnp.maximum(h2 + b2_ref[...], 0.0)                      # (TB, Hp) f32

    # fc_out, transposed: contract w3t (1, Hp) with h2 (TB, Hp) over the
    # hidden dim -> lane-dense (1, TB) row of Q-values (no padded lanes).
    q_row = lax.dot_general(
        w3t_ref[...], h2.astype(jnp.bfloat16),
        dimension_numbers=(((1,), (1,)), ((), ())),
        preferred_element_type=jnp.float32)                      # (1, TB) f32
    out_ref[...] = q_row + b3_ref[...]


def _pick_batch_tile(B):
    """Single tile for small B; otherwise 128-aligned tiles up to 2048 rows,
    keeping >= 2 grid steps so v7x's two TensorCores both get work."""
    if B <= 1024:
        return B
    tb = 2048
    while tb > 512 and pl.cdiv(B, tb) < 2:
        tb //= 2
    return tb


def qvaluenet_forward(x, a, kernel_params, *, tb=None):
    """x: (B, state_dim) f32/bf16, a: (B, action_dim) f32/bf16 -> (B, 1) f32."""
    w1x, w1a, b1, w2, b2, w3t, b3 = kernel_params
    B, S = x.shape
    _, A = a.shape
    Hp = w2.shape[0]

    TB = tb if tb is not None else _pick_batch_tile(B)
    G = pl.cdiv(B, TB)          # no wrapper-side pad; ragged last tile is OK

    def full(arr):
        return pl.BlockSpec(arr.shape, lambda i: (0,) * arr.ndim)

    flops = 2 * B * ((S + A) * Hp + Hp * Hp + Hp)
    bytes_accessed = int(
        B * (S + A) * x.dtype.itemsize
        + sum(int(p.size) * p.dtype.itemsize for p in kernel_params)
        + B * 4)

    out = pl.pallas_call(
        qvaluenet_kernel,
        out_shape=jax.ShapeDtypeStruct((G, TB), jnp.float32),
        grid=(G,),
        in_specs=[
            pl.BlockSpec((TB, S), lambda i: (i, 0)),
            pl.BlockSpec((TB, A), lambda i: (i, 0)),
            full(w1x), full(w1a), full(b1),
            full(w2), full(b2),
            full(w3t), full(b3),
        ],
        out_specs=pl.BlockSpec((1, TB), lambda i: (i, 0)),
        compiler_params=pltpu.CompilerParams(
            dimension_semantics=("parallel",),
            vmem_limit_bytes=32 * 1024 * 1024),
        cost_estimate=pl.CostEstimate(
            flops=int(flops), transcendentals=0,
            bytes_accessed=bytes_accessed),
    )(x, a, w1x, w1a, b1, w2, b2, w3t, b3)

    # (G, TB) row-major == batch order; keep only the real B rows.
    return out.reshape(-1)[:B][:, None]


def init_params(key, state_dim, hidden_dim, action_dim):
    """PyTorch-Linear-style init (uniform +/- 1/sqrt(fan_in)),
    weights stored as (in_features, out_features), f32."""
    in1 = state_dim + action_dim
    k1, k2, k3, k4, k5, k6 = jax.random.split(key, 6)

    def lin(kw, kb, fan_in, fan_out):
        bound = 1.0 / jnp.sqrt(jnp.float32(fan_in))
        w = jax.random.uniform(kw, (fan_in, fan_out), jnp.float32, -bound, bound)
        b = jax.random.uniform(kb, (1, fan_out), jnp.float32, -bound, bound)
        return w, b

    w1, b1 = lin(k1, k2, in1, hidden_dim)
    w2, b2 = lin(k3, k4, hidden_dim, hidden_dim)
    w3, b3 = lin(k5, k6, hidden_dim, 1)
    return (w1, b1, w2, b2, w3, b3)


def prepare_kernel_params(params, state_dim, hidden_dim, action_dim, lane=LANE):
    """One-time repack of the PyTorch-equivalent params into kernel layout:
       - fc1 weight split into state / action halves (no runtime concat)
       - hidden width zero-padded to the 128-lane vreg width
       - fc_out weight stored transposed as a (1, Hp) row (lane-dense output)
       - matmul operands (weights) cast to bf16; biases stay f32."""
    w1, b1, w2, b2, w3, b3 = params
    Hp = max(lane, pl.cdiv(hidden_dim, lane) * lane)

    def padto(arr, shape):
        return jnp.pad(arr, [(0, s - d) for d, s in zip(arr.shape, shape)])

    w1x = padto(w1[:state_dim], (state_dim, Hp)).astype(jnp.bfloat16)
    w1a = padto(w1[state_dim:], (action_dim, Hp)).astype(jnp.bfloat16)
    b1p = padto(b1, (1, Hp)).astype(jnp.float32)
    w2p = padto(w2, (Hp, Hp)).astype(jnp.bfloat16)
    b2p = padto(b2, (1, Hp)).astype(jnp.float32)
    w3t = padto(w3, (Hp, 1)).T.astype(jnp.bfloat16)    # (1, Hp)
    b3p = b3.astype(jnp.float32)                        # (1, 1)
    return (w1x, w1a, b1p, w2p, b2p, w3t, b3p)


def _reference(x, a, params):
    """Pure-JAX reference with the same bf16-operand / f32-accumulate math."""
    w1, b1, w2, b2, w3, b3 = params
    bf = jnp.bfloat16
    xa = jnp.concatenate([x, a], axis=1)
    h = jnp.maximum(jnp.dot(xa.astype(bf), w1.astype(bf),
                            preferred_element_type=jnp.float32) + b1, 0.0)
    h = jnp.maximum(jnp.dot(h.astype(bf), w2.astype(bf),
                            preferred_element_type=jnp.float32) + b2, 0.0)
    return jnp.dot(h.astype(bf), w3.astype(bf),
                   preferred_element_type=jnp.float32) + b3


if __name__ == "__main__":
    # Pendulum-v1: state_dim = 3, action_dim = 1; hidden_dim from the script = 64.
    state_dim, action_dim, hidden_dim = 3, 1, 64
    B = 8

    key = jax.random.PRNGKey(0)
    kx, ka, kp, kx2, ka2 = jax.random.split(key, 5)
    x = jax.random.normal(kx, (B, state_dim), jnp.float32)
    a = jax.random.normal(ka, (B, action_dim), jnp.float32)
    params = init_params(kp, state_dim, hidden_dim, action_dim)
    kparams = prepare_kernel_params(params, state_dim, hidden_dim, action_dim)

    q = qvaluenet_forward(x, a, kparams)
    jax.block_until_ready(q)
    q_ref = _reference(x, a, params)
    assert q.shape == (B, 1)
    assert jnp.allclose(q, q_ref, atol=1e-4, rtol=1e-4)

    # Second check: multi-step grid with a ragged last tile (no wrapper pad).
    B2 = 20
    x2 = jax.random.normal(kx2, (B2, state_dim), jnp.float32)
    a2 = jax.random.normal(ka2, (B2, action_dim), jnp.float32)
    q2 = qvaluenet_forward(x2, a2, kparams, tb=8)   # grid = (3,), last tile ragged
    jax.block_until_ready(q2)
    q2_ref = _reference(x2, a2, params)
    assert q2.shape == (B2, 1)
    assert jnp.allclose(q2, q2_ref, atol=1e-4, rtol=1e-4)

    print("KERNEL_OK")
</pallas_src>

<mosaic_0001>
module attributes {stable_mosaic.version = 11 : i64} {
  func.func @qvaluenet_kernel(%arg0: i32, %arg1: memref<8x3xf32, #tpu.memory_space<vmem>>, %arg2: memref<8x1xf32, #tpu.memory_space<vmem>>, %arg3: memref<3x128xbf16, #tpu.memory_space<vmem>>, %arg4: memref<1x128xbf16, #tpu.memory_space<vmem>>, %arg5: memref<1x128xf32, #tpu.memory_space<vmem>>, %arg6: memref<128x128xbf16, #tpu.memory_space<vmem>>, %arg7: memref<1x128xf32, #tpu.memory_space<vmem>>, %arg8: memref<1x128xbf16, #tpu.memory_space<vmem>>, %arg9: memref<1x1xf32, #tpu.memory_space<vmem>>, %arg10: memref<1x8xf32, #tpu.memory_space<vmem>>) attributes {dimension_semantics = [#tpu.dimension_semantics<parallel>], iteration_bounds = array<i64: 1>, scalar_prefetch = 0 : i64, scratch_operands = 0 : i64, tpu.core_type = #tpu.core_type<tc>, window_params = [{transform_indices = @transform_0, window_bounds = array<i64: 8, 3>}, {transform_indices = @transform_1, window_bounds = array<i64: 8, 1>}, {pipeline_mode = #tpu.pipeline_mode<synchronous>, transform_indices = @transform_2, window_bounds = array<i64: 3, 128>}, {pipeline_mode = #tpu.pipeline_mode<synchronous>, transform_indices = @transform_3, window_bounds = array<i64: 1, 128>}, {pipeline_mode = #tpu.pipeline_mode<synchronous>, transform_indices = @transform_4, window_bounds = array<i64: 1, 128>}, {pipeline_mode = #tpu.pipeline_mode<synchronous>, transform_indices = @transform_5, window_bounds = array<i64: 128, 128>}, {pipeline_mode = #tpu.pipeline_mode<synchronous>, transform_indices = @transform_6, window_bounds = array<i64: 1, 128>}, {pipeline_mode = #tpu.pipeline_mode<synchronous>, transform_indices = @transform_7, window_bounds = array<i64: 1, 128>}, {pipeline_mode = #tpu.pipeline_mode<synchronous>, transform_indices = @transform_8, window_bounds = array<i64: 1, 1>}, {transform_indices = @transform_9, window_bounds = array<i64: 1, 8>}]} {
    %c0 = arith.constant 0 : index
    %c0_0 = arith.constant 0 : index
    %0 = vector.load %arg1[%c0, %c0_0] : memref<8x3xf32, #tpu.memory_space<vmem>>, vector<8x3xf32>
    %1 = arith.truncf %0 : vector<8x3xf32> to vector<8x3xbf16>
    %c0_1 = arith.constant 0 : index
    %c0_2 = arith.constant 0 : index
    %2 = vector.load %arg2[%c0_1, %c0_2] : memref<8x1xf32, #tpu.memory_space<vmem>>, vector<8x1xf32>
    %3 = arith.truncf %2 : vector<8x1xf32> to vector<8x1xbf16>
    %c0_3 = arith.constant 0 : index
    %c0_4 = arith.constant 0 : index
    %4 = vector.load %arg3[%c0_3, %c0_4] : memref<3x128xbf16, #tpu.memory_space<vmem>>, vector<3x128xbf16>
    %cst = arith.constant dense<0.000000e+00> : vector<8x128xf32>
    %5 = tpu.matmul %1, %4, %cst {dimension_numbers = #tpu.dot_dimension_numbers<[1], [0], [0], [1], [0, 0, 1, 1], [], []>} : vector<8x3xbf16>, vector<3x128xbf16>, vector<8x128xf32> -> vector<8x128xf32>
    %c0_5 = arith.constant 0 : index
    %c0_6 = arith.constant 0 : index
    %6 = vector.load %arg4[%c0_5, %c0_6] : memref<1x128xbf16, #tpu.memory_space<vmem>>, vector<1x128xbf16>
    %cst_7 = arith.constant dense<0.000000e+00> : vector<8x128xf32>
    %7 = tpu.matmul %3, %6, %cst_7 {dimension_numbers = #tpu.dot_dimension_numbers<[1], [0], [0], [1], [0, 0, 1, 1], [], []>} : vector<8x1xbf16>, vector<1x128xbf16>, vector<8x128xf32> -> vector<8x128xf32>
    %8 = arith.addf %5, %7 : vector<8x128xf32>
    %c0_8 = arith.constant 0 : index
    %c0_9 = arith.constant 0 : index
    %9 = vector.load %arg5[%c0_8, %c0_9] : memref<1x128xf32, #tpu.memory_space<vmem>>, vector<1x128xf32>
    %10 = vector.broadcast %9 : vector<1x128xf32> to vector<8x128xf32>
    %11 = arith.addf %8, %10 : vector<8x128xf32>
    %cst_10 = arith.constant 0.000000e+00 : f32
    %12 = vector.broadcast %cst_10 : f32 to vector<8x128xf32>
    %13 = arith.maximumf %11, %12 : vector<8x128xf32>
    %14 = arith.truncf %13 : vector<8x128xf32> to vector<8x128xbf16>
    %c0_11 = arith.constant 0 : index
    %c0_12 = arith.constant 0 : index
    %15 = vector.load %arg6[%c0_11, %c0_12] : memref<128x128xbf16, #tpu.memory_space<vmem>>, vector<128x128xbf16>
    %cst_13 = arith.constant dense<0.000000e+00> : vector<8x128xf32>
    %16 = tpu.matmul %14, %15, %cst_13 {dimension_numbers = #tpu.dot_dimension_numbers<[1], [0], [0], [1], [0, 0, 1, 1], [], []>} : vector<8x128xbf16>, vector<128x128xbf16>, vector<8x128xf32> -> vector<8x128xf32>
    %c0_14 = arith.constant 0 : index
    %c0_15 = arith.constant 0 : index
    %17 = vector.load %arg7[%c0_14, %c0_15] : memref<1x128xf32, #tpu.memory_space<vmem>>, vector<1x128xf32>
    %18 = vector.broadcast %17 : vector<1x128xf32> to vector<8x128xf32>
    %19 = arith.addf %16, %18 : vector<8x128xf32>
    %cst_16 = arith.constant 0.000000e+00 : f32
    %20 = vector.broadcast %cst_16 : f32 to vector<8x128xf32>
    %21 = arith.maximumf %19, %20 : vector<8x128xf32>
    %c0_17 = arith.constant 0 : index
    %c0_18 = arith.constant 0 : index
    %22 = vector.load %arg8[%c0_17, %c0_18] : memref<1x128xbf16, #tpu.memory_space<vmem>>, vector<1x128xbf16>
    %23 = arith.truncf %21 : vector<8x128xf32> to vector<8x128xbf16>
    %cst_19 = arith.constant dense<0.000000e+00> : vector<1x8xf32>
    %24 = tpu.matmul %22, %23, %cst_19 {dimension_numbers = #tpu.dot_dimension_numbers<[1], [1], [0], [0], [0, 0, 1, 0], [], []>} : vector<1x128xbf16>, vector<8x128xbf16>, vector<1x8xf32> -> vector<1x8xf32>
    %c0_20 = arith.constant 0 : index
    %c0_21 = arith.constant 0 : index
    %25 = vector.load %arg9[%c0_20, %c0_21] : memref<1x1xf32, #tpu.memory_space<vmem>>, vector<1x1xf32>
    %26 = vector.broadcast %25 : vector<1x1xf32> to vector<1x8xf32>
    %27 = arith.addf %24, %26 : vector<1x8xf32>
    %c0_22 = arith.constant 0 : index
    %c0_23 = arith.constant 0 : index
    %28 = vector.load %arg10[%c0_22, %c0_23] : memref<1x8xf32, #tpu.memory_space<vmem>>, vector<1x8xf32>
    tpu.vector_store %arg10[%c0_22, %c0_23], %27 {strides = array<i32>} : memref<1x8xf32, #tpu.memory_space<vmem>>, vector<1x8xf32>,
    return
  }
  func.func @transform_0(%arg0: i32) -> (i32, i32) {
    %c0_i32 = arith.constant 0 : i32
    %c0_i32_0 = arith.constant 0 : i32
    return %arg0, %c0_i32 : i32, i32
  }
  func.func @transform_1(%arg0: i32) -> (i32, i32) {
    %c0_i32 = arith.constant 0 : i32
    %c0_i32_0 = arith.constant 0 : i32
    return %arg0, %c0_i32 : i32, i32
  }
  func.func @transform_2(%arg0: i32) -> (i32, i32) {
    %c0_i32 = arith.constant 0 : i32
    %c0_i32_0 = arith.constant 0 : i32
    %c0_i32_1 = arith.constant 0 : i32
    return %c0_i32, %c0_i32_0 : i32, i32
  }
  func.func @transform_3(%arg0: i32) -> (i32, i32) {
    %c0_i32 = arith.constant 0 : i32
    %c0_i32_0 = arith.constant 0 : i32
    %c0_i32_1 = arith.constant 0 : i32
    return %c0_i32, %c0_i32_0 : i32, i32
  }
  func.func @transform_4(%arg0: i32) -> (i32, i32) {
    %c0_i32 = arith.constant 0 : i32
    %c0_i32_0 = arith.constant 0 : i32
    %c0_i32_1 = arith.constant 0 : i32
    return %c0_i32, %c0_i32_0 : i32, i32
  }
  func.func @transform_5(%arg0: i32) -> (i32, i32) {
    %c0_i32 = arith.constant 0 : i32
    %c0_i32_0 = arith.constant 0 : i32
    %c0_i32_1 = arith.constant 0 : i32
    return %c0_i32, %c0_i32_0 : i32, i32
  }
  func.func @transform_6(%arg0: i32) -> (i32, i32) {
    %c0_i32 = arith.constant 0 : i32
    %c0_i32_0 = arith.constant 0 : i32
    %c0_i32_1 = arith.constant 0 : i32
    return %c0_i32, %c0_i32_0 : i32, i32
  }
  func.func @transform_7(%arg0: i32) -> (i32, i32) {
    %c0_i32 = arith.constant 0 : i32
    %c0_i32_0 = arith.constant 0 : i32
    %c0_i32_1 = arith.constant 0 : i32
    return %c0_i32, %c0_i32_0 : i32, i32
  }
  func.func @transform_8(%arg0: i32) -> (i32, i32) {
    %c0_i32 = arith.constant 0 : i32
    %c0_i32_0 = arith.constant 0 : i32
    %c0_i32_1 = arith.constant 0 : i32
    return %c0_i32, %c0_i32_0 : i32, i32
  }
  func.func @transform_9(%arg0: i32) -> (i32, i32) {
    %c0_i32 = arith.constant 0 : i32
    %c0_i32_0 = arith.constant 0 : i32
    return %arg0, %c0_i32 : i32, i32
  }
}

</mosaic_0001>

<llo_original>
// kernel: tpu_custom_call.1
$region0: #{tpu_custom_call.1}
  #allocation0 [shape = 'u32[]', space=smem, size = 0x4, offset = 0x4, fixed_abs, tag = 'smem constant byte address 0x4 - core index']
  #allocation1 [shape = 'u32[144,128]{1,0:T(1,128)}', space=vmem, size = 0x12000, scoped, tag = 'internal scratch']
  #allocation2 [shape = 'f32[1,1]{1,0:T(1,128)S(1)}', space=vmem, size = 0x200, scoped, tag = 'scoped memory for tpu_custom_call.1']
  %s0 = inlined_call_operand.vmem [shape: f32[8,3], index: 0, kind: input, shape index: {}]
  %s1 = inlined_call_operand.vmem [shape: f32[8,1], index: 1, kind: input, shape index: {}]
  %s2 = inlined_call_operand.vmem [shape: bf16[3,128], index: 2, kind: input, shape index: {}]
  %s3 = inlined_call_operand.vmem [shape: bf16[1,128], index: 3, kind: input, shape index: {}]
  %s4 = inlined_call_operand.vmem [shape: f32[1,128], index: 4, kind: input, shape index: {}]
  %s5 = inlined_call_operand.hbm [shape: bf16[128,128], index: 5, kind: input, shape index: {}]
  %s6 = inlined_call_operand.vmem [shape: f32[1,128], index: 6, kind: input, shape index: {}]
  %s7 = inlined_call_operand.vmem [shape: bf16[1,128], index: 7, kind: input, shape index: {}]
  %s8 = inlined_call_operand.<no memory space> [shape: f32[1,1], index: 8, kind: input, shape index: {}]
  %s9 = inlined_call_operand.hbm [shape: f32[1,8], index: 9, kind: output, shape index: {}]
  %s10 = sld [smem:[#allocation0]]
  $region50: #{tpu_custom_call.1} parent=0
    _
  %s12 = ssub.s32 1, %s10
  %s13 = scalar_select 0, %s12, %s10
  %v14 = vstv %s8
  %15 = vst [vmem:[#allocation2] sm:$0x1] %v14
  $region1: #{tpu_custom_call.1} parent=0
    #allocation3 [shape = 'u8[32768]{0}', space=vmem, size = 0x8000, scoped, tag = 'input window, operand 5, single buffered']
    #allocation4 [shape = 's32[1]{0}', space=sflag, size = 0x4, scoped, tag = 'scoped memory for tpu_custom_call.1']
    #allocation5 [shape = 's32[1]{0}', space=sflag, size = 0x4, scoped, tag = 'scoped memory for tpu_custom_call.1']
    #allocation6 [shape = 'u8[512]{0}', space=vmem, size = 0x400, scoped, tag = 'output window, operand 0, single buffered']
    %16 = vsyncpa [#allocation4], 0
    %17 = vsyncpa [#allocation5], 0
    // Predicated region
    $region2: #{tpu_custom_call.1} parent=1 // pred_check
      _
    $region3: #{tpu_custom_call.1} parent=1 // pred_check_branch
      %19 = sbr.rel (0) target = $region5
    $region4: #{tpu_custom_call.1} parent=1 // pred_region
      _
    $region5: #{tpu_custom_call.1} parent=1 // pred_fallthru
      _
    // Predicated region
    $region6: #{tpu_custom_call.1} parent=1 // pred_check
      _
    $region7: #{tpu_custom_call.1} parent=1 // pred_check_branch
      %21 = sbr.rel (0) target = $region9
    $region8: #{tpu_custom_call.1} parent=1 // pred_region
      _
    $region9: #{tpu_custom_call.1} parent=1 // pred_fallthru
      _
    // Predicated region
    $region10: #{tpu_custom_call.1} parent=1 // pred_check
      _
    $region11: #{tpu_custom_call.1} parent=1 // pred_check_branch
      %23 = sbr.rel (0) target = $region13
    $region12: #{tpu_custom_call.1} parent=1 // pred_region
      _
    $region13: #{tpu_custom_call.1} parent=1 // pred_fallthru
      _
    // Predicated region
    $region14: #{tpu_custom_call.1} parent=1 // pred_check
      _
    $region15: #{tpu_custom_call.1} parent=1 // pred_check_branch
      %25 = sbr.rel (0) target = $region17
    $region16: #{tpu_custom_call.1} parent=1 // pred_region
      _
    $region17: #{tpu_custom_call.1} parent=1 // pred_fallthru
      _
    // Predicated region
    $region18: #{tpu_custom_call.1} parent=1 // pred_check
      _
    $region19: #{tpu_custom_call.1} parent=1 // pred_check_branch
      %27 = sbr.rel (0) target = $region21
    $region20: #{tpu_custom_call.1} parent=1 // pred_region
      _
    $region21: #{tpu_custom_call.1} parent=1 // pred_fallthru
      _
    // Predicated region
    $region22: #{tpu_custom_call.1} parent=1 // pred_check
      _
    $region23: #{tpu_custom_call.1} parent=1 // pred_check_branch
      %29 = sbr.rel (0) target = $region25
    $region24: #{tpu_custom_call.1} parent=1 // pred_region
      %s31 = ssub.s32 1024, 1024
      %32 = vsyncadd [#allocation4], %s31
      %s33 = sshll.u32 [#allocation3], 4
      %s34 = int_to_ptr.vmem [resolvable:$true] %s33
      %39 = dma.hbm_to_vmem [thread:$0]  %s5, 1024, %s34, [#allocation4], 64, 64, 4
    $region25: #{tpu_custom_call.1} parent=1 // pred_fallthru
      _
    // Predicated region
    $region26: #{tpu_custom_call.1} parent=1 // pred_check
      _
    $region27: #{tpu_custom_call.1} parent=1 // pred_check_branch
      %41 = sbr.rel (0) target = $region29
    $region28: #{tpu_custom_call.1} parent=1 // pred_region
      _
    $region29: #{tpu_custom_call.1} parent=1 // pred_fallthru
      _
    // Predicated region
    $region30: #{tpu_custom_call.1} parent=1 // pred_check
      _
    $region31: #{tpu_custom_call.1} parent=1 // pred_check_branch
      %43 = sbr.rel (0) target = $region33
    $region32: #{tpu_custom_call.1} parent=1 // pred_region
      _
    $region33: #{tpu_custom_call.1} parent=1 // pred_fallthru
      _
    // Predicated region
    $region34: #{tpu_custom_call.1} parent=1 // pred_check
      _
    $region35: #{tpu_custom_call.1} parent=1 // pred_check_branch
      %45 = sbr.rel (0) target = $region37
    $region36: #{tpu_custom_call.1} parent=1 // pred_region
      _
    $region37: #{tpu_custom_call.1} parent=1 // pred_fallthru
      _
    // Predicated region
    $region38: #{tpu_custom_call.1} parent=1 // pred_check
      _
    $region39: #{tpu_custom_call.1} parent=1 // pred_check_branch
      %47 = sbr.rel (0) target = $region41
    $region40: #{tpu_custom_call.1} parent=1 // pred_region
      %48 = dma.done [#allocation4], 1024
    $region41: #{tpu_custom_call.1} parent=1 // pred_fallthru
      _
    %v50 = vld [vmem:[%s0] sm:$0xff]
    %v51 = vpack.c.bf16 %v50, %v50
    %v52 = vld [vmem:[%s1] sm:$0xff]
    %v53 = vpack.c.bf16 %v52, %v52
    %v54 = vld [vmem:[%s2] sm:$0x3]
    %v55 = vld [vmem:[%s3] sm:$0x1]
    %vm56 = vcmask 7168
    %v58 = vsel %vm56, %v53, 0
    %vm60 = vcmask 1040384
    %v61 = vsel 0, 4294967295, 65535
    %v62 = vsel %vm60, %v61, 0
    %v64 = vand.u32 %v55, %v62
    %66 = vmatprep.subr.bf16.mxu0 0
    %67 = vmatpush1.bf16.msra.mxu0 0
    %68 = vmatprep.subr.bf16.mxu0 0
    %69 = vmatpush1.bf16.msra.mxu0 0
    %70 = vmatprep.subr.bf16.mxu0 0
    %71 = vmatpush1.bf16.msra.mxu0 0
    %72 = vmatprep.subr.bf16.mxu0 0
    %73 = vmatpush1.bf16.msra.mxu0 0
    %74 = vmatprep.subr.bf16.mxu0 0
    %75 = vmatpush1.bf16.msra.mxu0 0
    %76 = vmatprep.subr.bf16.mxu0 0
    %77 = vmatpush1.bf16.msra.mxu0 0
    %78 = vmatprep.subr.bf16.mxu0 0
    %79 = vmatpush1.bf16.msra.mxu0 0
    %80 = vmatprep.subr.bf16.mxu0 0
    %81 = vmatpush1.bf16.msra.mxu0 %v64
    %82 = vmatprep.subr.bf16.mxu0 0
    %83 = vmatpush2.bf16.msra.mxu0 0
    %84 = vmatprep.subr.bf16.mxu0 0
    %85 = vmatpush2.bf16.msra.mxu0 0
    %86 = vmatprep.subr.bf16.mxu0 0
    %87 = vmatpush2.bf16.msra.mxu0 0
    %88 = vmatprep.subr.bf16.mxu0 0
    %89 = vmatpush2.bf16.msra.mxu0 0
    %90 = vmatprep.subr.bf16.mxu0 0
    %91 = vmatpush2.bf16.msra.mxu0 0
    %92 = vmatprep.subr.bf16.mxu0 0
    %93 = vmatpush2.bf16.msra.mxu0 0
    %94 = vmatprep.subr.bf16.mxu0 0
    %95 = vmatpush2.bf16.msra.mxu0 0
    %96 = vmatprep.subr.bf16.mxu0 0
    %97 = vmatpush2.bf16.msra.mxu0 0
    %98 = vmatprep.mubr.bf16.mxu0 0
    %99 = vmatmul.mubr.bf16.gmra.mxu0 %v58
    %v100 = vpop.f32.mrf.mxu0
    %v101 = vadd.f32 0.0, %v100
    %v102 = vpop.f32.mrf.mxu0
    %v103 = vpop.f32.mrf.mxu0
    %v104 = vpop.f32.mrf.mxu0
    %105 = vdwg.mxu0
    %vm106 = vcmask 23552
    %v108 = vsel %vm106, %v51, 0
    %vm110 = vcmask 1041408
    %v111 = vsel %vm60, 4294967295, 65535
    %v112 = vsel %vm110, %v111, 0
    %v114 = vand.u32 %v54, %v112
    %116 = vmatprep.subr.bf16.mxu0 0
    %117 = vmatpush1.bf16.msra.mxu0 0
    %118 = vmatprep.subr.bf16.mxu0 0
    %119 = vmatpush1.bf16.msra.mxu0 0
    %120 = vmatprep.subr.bf16.mxu0 0
    %121 = vmatpush1.bf16.msra.mxu0 0
    %122 = vmatprep.subr.bf16.mxu0 0
    %123 = vmatpush1.bf16.msra.mxu0 0
    %124 = vmatprep.subr.bf16.mxu0 0
    %125 = vmatpush1.bf16.msra.mxu0 0
    %126 = vmatprep.subr.bf16.mxu0 0
    %127 = vmatpush1.bf16.msra.mxu0 0
    %128 = vmatprep.subr.bf16.mxu0 0
    %129 = vmatpush1.bf16.msra.mxu0 0
    %130 = vmatprep.subr.bf16.mxu0 0
    %131 = vmatpush1.bf16.msra.mxu0 %v114
    %132 = vmatprep.subr.bf16.mxu0 0
    %133 = vmatpush2.bf16.msra.mxu0 0
    %134 = vmatprep.subr.bf16.mxu0 0
    %135 = vmatpush2.bf16.msra.mxu0 0
    %136 = vmatprep.subr.bf16.mxu0 0
    %137 = vmatpush2.bf16.msra.mxu0 0
    %138 = vmatprep.subr.bf16.mxu0 0
    %139 = vmatpush2.bf16.msra.mxu0 0
    %140 = vmatprep.subr.bf16.mxu0 0
    %141 = vmatpush2.bf16.msra.mxu0 0
    %142 = vmatprep.subr.bf16.mxu0 0
    %143 = vmatpush2.bf16.msra.mxu0 0
    %144 = vmatprep.subr.bf16.mxu0 0
    %145 = vmatpush2.bf16.msra.mxu0 0
    %146 = vmatprep.subr.bf16.mxu0 0
    %147 = vmatpush2.bf16.msra.mxu0 0
    %148 = vmatprep.mubr.bf16.mxu0 0
    %149 = vmatmul.mubr.bf16.gmra.mxu0 %v108
    %v150 = vpop.f32.mrf.mxu0
    %v151 = vadd.f32 %v101, %v150
    %v152 = vpop.f32.mrf.mxu0
    %v153 = vpop.f32.mrf.mxu0
    %v154 = vpop.f32.mrf.mxu0
    %155 = vdwg.mxu0
    %v156 = vld [vmem:[%s4] sm:$0x1]
    %v158 = vlaneseq
    %v159 = vshrl.u32 %v158, 7
    %v160 = vsub.s32 0, %v159
    %v161 = vrot.slane %v156, %v160
    %v163 = vadd.f32 %v151, %v161
    %v164 = vmax.f32 %v163, 0.0
    %v165 = vpack.c.bf16 %v164, %v164
    %v166 = vld [vmem:[#allocation3] sm:$0xf]
    %v167 = vld [vmem:[#allocation3 + $0x4] sm:$0xf]
    %v168 = vld [vmem:[#allocation3 + $0x8] sm:$0xf]
    %v169 = vld [vmem:[#allocation3 + $0xc] sm:$0xf]
    %v170 = vld [vmem:[#allocation3 + $0x10] sm:$0xf]
    %v171 = vld [vmem:[#allocation3 + $0x14] sm:$0xf]
    %v172 = vld [vmem:[#allocation3 + $0x18] sm:$0xf]
    %v173 = vld [vmem:[#allocation3 + $0x1c] sm:$0xf]
    %v174 = vld [vmem:[#allocation3 + $0x20] sm:$0xf]
    %v175 = vld [vmem:[#allocation3 + $0x24] sm:$0xf]
    %v176 = vld [vmem:[#allocation3 + $0x28] sm:$0xf]
    %v177 = vld [vmem:[#allocation3 + $0x2c] sm:$0xf]
    %v178 = vld [vmem:[#allocation3 + $0x30] sm:$0xf]
    %v179 = vld [vmem:[#allocation3 + $0x34] sm:$0xf]
    %v180 = vld [vmem:[#allocation3 + $0x38] sm:$0xf]
    %v181 = vld [vmem:[#allocation3 + $0x3c] sm:$0xf]
    %v182 = vld [vmem:[%s6] sm:$0x1]
    %v184 = vlaneseq
    %v185 = vshrl.u32 %v184, 7
    %v186 = vsub.s32 0, %v185
    %v187 = vrot.slane %v182, %v186
    %v205 = vunpack.c.l.b16 %v166
    %v206 = vunpack.c.l.b16 %v167
    %v207 = vunpack.c.l.b16 %v168
    %v208 = vunpack.c.l.b16 %v169
    %v209 = vunpack.c.l.b16 %v170
    %v210 = vunpack.c.l.b16 %v171
    %v211 = vunpack.c.l.b16 %v172
    %v212 = vunpack.c.l.b16 %v173
    %v213 = vunpack.c.l.b16 %v174
    %v214 = vunpack.c.l.b16 %v175
    %v215 = vunpack.c.l.b16 %v176
    %v216 = vunpack.c.l.b16 %v177
    %v217 = vunpack.c.l.b16 %v178
    %v218 = vunpack.c.l.b16 %v179
    %v219 = vunpack.c.l.b16 %v180
    %v220 = vunpack.c.l.b16 %v181
    %v221 = vpack.c.b16 %v206, %v205
    %v222 = vpack.c.b16 %v208, %v207
    %v223 = vpack.c.b16 %v210, %v209
    %v224 = vpack.c.b16 %v212, %v211
    %v225 = vpack.c.b16 %v214, %v213
    %v226 = vpack.c.b16 %v216, %v215
    %v227 = vpack.c.b16 %v218, %v217
    %v228 = vpack.c.b16 %v220, %v219
    %237 = vmatprep.subr.bf16.mxu0 0
    %238 = vmatpush1.bf16.msra.mxu0 %v228
    %239 = vmatprep.subr.bf16.mxu0 0
    %240 = vmatpush1.bf16.msra.mxu0 %v227
    %241 = vmatprep.subr.bf16.mxu0 0
    %242 = vmatpush1.bf16.msra.mxu0 %v226
    %243 = vmatprep.subr.bf16.mxu0 0
    %244 = vmatpush1.bf16.msra.mxu0 %v225
    %245 = vmatprep.subr.bf16.mxu0 0
    %246 = vmatpush1.bf16.msra.mxu0 %v224
    %247 = vmatprep.subr.bf16.mxu0 0
    %248 = vmatpush1.bf16.msra.mxu0 %v223
    %249 = vmatprep.subr.bf16.mxu0 0
    %250 = vmatpush1.bf16.msra.mxu0 %v222
    %251 = vmatprep.subr.bf16.mxu0 0
    %252 = vmatpush1.bf16.msra.mxu0 %v221
    %253 = vmatprep.subr.bf16.mxu0 0
    %254 = vmatpush2.bf16.msra.mxu0 0
    %255 = vmatprep.subr.bf16.mxu0 0
    %256 = vmatpush2.bf16.msra.mxu0 0
    %257 = vmatprep.subr.bf16.mxu0 0
    %258 = vmatpush2.bf16.msra.mxu0 0
    %259 = vmatprep.subr.bf16.mxu0 0
    %260 = vmatpush2.bf16.msra.mxu0 0
    %261 = vmatprep.subr.bf16.mxu0 0
    %262 = vmatpush2.bf16.msra.mxu0 0
    %263 = vmatprep.subr.bf16.mxu0 0
    %264 = vmatpush2.bf16.msra.mxu0 0
    %265 = vmatprep.subr.bf16.mxu0 0
    %266 = vmatpush2.bf16.msra.mxu0 0
    %267 = vmatprep.subr.bf16.mxu0 0
    %268 = vmatpush2.bf16.msra.mxu0 0
    %269 = vmatprep.mubr.bf16.mxu0 0
    %270 = vmatmul.mubr.bf16.gmra.mxu0 %v165
    %v271 = vpop.f32.mrf.mxu0
    %v272 = vadd.f32 %v187, %v271
    %v273 = vpop.f32.mrf.mxu0
    %v274 = vpop.f32.mrf.mxu0
    %v275 = vpop.f32.mrf.mxu0
    %276 = vdwg.mxu0
    %v277 = vmax.f32 %v272, 0.0
    %v278 = vld [vmem:[%s7] sm:$0x1]
    %v279 = vpack.c.bf16 %v277, %v277
    %v280 = vld [vmem:[#allocation2] sm:$0x1]
    %282 = vset.pattern.permute.xlu0 0
    %283 = vperm.xlu0 %282, %v280
    %v284 = vpop.permute.xlu0 %283
    %v286 = vlaneseq
    %v287 = vshrl.u32 %v286, 7
    %v288 = vsub.s32 0, %v287
    %v289 = vrot.slane %v284, %v288
    %290 = vmatprep.subr.bf16.mxu0 0
    %291 = vmatpush1.bf16.xpose.msra.mxu0 0
    %292 = vmatprep.subr.bf16.mxu0 0
    %293 = vmatpush1.bf16.xpose.msra.mxu0 0
    %294 = vmatprep.subr.bf16.mxu0 0
    %295 = vmatpush1.bf16.xpose.msra.mxu0 0
    %296 = vmatprep.subr.bf16.mxu0 0
    %297 = vmatpush1.bf16.xpose.msra.mxu0 0
    %298 = vmatprep.subr.bf16.mxu0 0
    %299 = vmatpush1.bf16.xpose.msra.mxu0 0
    %300 = vmatprep.subr.bf16.mxu0 0
    %301 = vmatpush1.bf16.xpose.msra.mxu0 0
    %302 = vmatprep.subr.bf16.mxu0 0
    %303 = vmatpush1.bf16.xpose.msra.mxu0 0
    %304 = vmatprep.subr.bf16.mxu0 0
    %305 = vmatpush1.bf16.xpose.msra.mxu0 %v279
    %306 = vmatprep.subr.bf16.mxu0 0
    %307 = vmatpush2.bf16.xpose.msra.mxu0 0
    %308 = vmatprep.subr.bf16.mxu0 0
    %309 = vmatpush2.bf16.xpose.msra.mxu0 0
    %310 = vmatprep.subr.bf16.mxu0 0
    %311 = vmatpush2.bf16.xpose.msra.mxu0 0
    %312 = vmatprep.subr.bf16.mxu0 0
    %313 = vmatpush2.bf16.xpose.msra.mxu0 0
    %314 = vmatprep.subr.bf16.mxu0 0
    %315 = vmatpush2.bf16.xpose.msra.mxu0 0
    %316 = vmatprep.subr.bf16.mxu0 0
    %317 = vmatpush2.bf16.xpose.msra.mxu0 0
    %318 = vmatprep.subr.bf16.mxu0 0
    %319 = vmatpush2.bf16.xpose.msra.mxu0 0
    %320 = vmatprep.subr.bf16.mxu0 0
    %321 = vmatpush2.bf16.xpose.msra.mxu0 0
    %322 = vmatprep.mubr.bf16.mxu0 0
    %323 = vmatmul.mubr.bf16.gmra.mxu0 %v278
    %v324 = vpop.f32.mrf.mxu0
    %v325 = vadd.f32 %v289, %v324
    %v326 = vpop.f32.mrf.mxu0
    %v327 = vpop.f32.mrf.mxu0
    %v328 = vpop.f32.mrf.mxu0
    %329 = vdwg.mxu0
    %vm330 = vcmask 57344
    %331 = vst.msk [vmem:[#allocation6] sm:$0x1] %vm330, %v325
    // Predicated region
    $region42: #{tpu_custom_call.1} parent=1 // pred_check
      _
    $region43: #{tpu_custom_call.1} parent=1 // pred_check_branch
      %333 = sbr.rel (0) target = $region45
    $region44: #{tpu_custom_call.1} parent=1 // pred_region
      %s335 = ssub.s32 16, 16
      %336 = vsyncadd [#allocation5], %s335
      %s338 = sshll.u32 [#allocation6], 4
      %s339 = int_to_ptr.vmem [resolvable:$true] %s338
      %341 = dma.vmem_to_hbm [thread:$0]  %s339, 16, %s9, [#allocation5]
    $region45: #{tpu_custom_call.1} parent=1 // pred_fallthru
      _
    // Predicated region
    $region46: #{tpu_custom_call.1} parent=1 // pred_check
      _
    $region47: #{tpu_custom_call.1} parent=1 // pred_check_branch
      %343 = sbr.rel (0) target = $region49
    $region48: #{tpu_custom_call.1} parent=1 // pred_region
      %344 = dma.done [#allocation5], 16
    $region49: #{tpu_custom_call.1} parent=1 // pred_fallthru
      _
    %345 = vsyncpa [#allocation4], 1
    %346 = vsyncpa [#allocation5], 1

</llo_original>
